<compile_context>
chip_gen: v6e
topology: v6e:2x2x1
jax: 0.10.0
libtpu: 0.0.40
codegen_flags: <defaults>
</compile_context>

<pallas_src>
import jax
import jax.numpy as jnp
from jax.experimental import pallas as pl
from jax.experimental.pallas import tpu as pltpu

NUM_CLASSES = 400  # consistent with d_model = 400 * 7 in the module
LANE = 128
SUBLANE = 8

MODALITIES = ("rgb", "flow", "depth", "skeleton", "face", "left_hand", "right_hand")


def _round_up(n, m):
    return ((n + m - 1) // m) * m


# ----------------------------------------------------------------------------
# Fused kernel: one MXU matmul over the concatenated (already weight-folded)
# modality features + a single pre-summed bias add in the epilogue.
# ----------------------------------------------------------------------------
def _fused_stream_fusion_kernel(x_ref, w_ref, b_ref, o_ref):
    # x_ref: (Bpad, K) bf16   (K = Mnz * D, modalities concatenated on K)
    # w_ref: (K, Cpad) bf16   (modality weight folded in, concatenated on K)
    # b_ref: (1, Cpad) f32    (pre-summed weighted biases)
    # o_ref: (Bpad, Cpad) f32
    acc = jnp.dot(x_ref[...], w_ref[...], preferred_element_type=jnp.float32)
    o_ref[...] = (acc + b_ref[...]).astype(o_ref.dtype)


def fused_weighted_streams(x_cat, W_cat, b_total):
    """x_cat: (Bpad, K) bf16, W_cat: (K, Cpad) bf16, b_total: (1, Cpad) f32
    -> (Bpad, Cpad) f32 = x_cat @ W_cat + b_total."""
    Bp, K = x_cat.shape
    Cpad = W_cat.shape[-1]
    # Toy sizes -> everything is VMEM resident; one grid step, full-array
    # blocks, lane-dense (Cpad multiple of 128) unmasked output stores.
    return pl.pallas_call(
        _fused_stream_fusion_kernel,
        out_shape=jax.ShapeDtypeStruct((Bp, Cpad), jnp.float32),
        grid=(1,),
        in_specs=[
            pl.BlockSpec((Bp, K), lambda i: (0, 0)),
            pl.BlockSpec((K, Cpad), lambda i: (0, 0)),
            pl.BlockSpec((1, Cpad), lambda i: (0, 0)),
        ],
        out_specs=pl.BlockSpec((Bp, Cpad), lambda i: (0, 0)),
        compiler_params=pltpu.CompilerParams(
            dimension_semantics=("arbitrary",)),
    )(x_cat, W_cat, b_total)


# ----------------------------------------------------------------------------
# Sees7 module (JAX/Pallas port)
# ----------------------------------------------------------------------------
class Sees7:
    def __init__(self, backbone_W, backbone_b):
        faceWeight = 0.0
        skeletonWeight = 1.0
        depthWeigth = 0.0
        flowWeight = 0.0
        rgbWeight = 0.0
        lefthandWeight = 0.0
        righthandWeight = 0.0
        self.modalityWeights = {
            "rgb": rgbWeight,
            "flow": flowWeight,
            "depth": depthWeigth,
            "skeleton": skeletonWeight,
            "face": faceWeight,
            "left_hand": lefthandWeight,
            "right_hand": righthandWeight,
        }
        # Synthetic stand-in for the externally injected multistream_backbone.
        self.backbone_W = backbone_W  # (7, D, C) f32
        self.backbone_b = backbone_b  # (7, C)    f32
        # TODO(synk): nn.TransformerEncoder(d_model=2800, nhead=8, num_layers=1)
        # is constructed in __init__ but never invoked in forward(); not ported.
        self.head = None

        D = backbone_W.shape[1]
        C = backbone_W.shape[2]
        self._C = C
        Cpad = _round_up(C, LANE)  # 400 -> 512: lane-dense output stores
        pad_c = Cpad - C

        # Trace-time pruning of zero-weight modalities (weights are Python
        # floats fixed here).  Fold the modality weight into W/b, concatenate
        # the selected modalities along the contraction (K) axis, pre-sum the
        # biases, and cast weights to bf16 (f32 accumulation in the kernel).
        selected = [(i, float(self.modalityWeights[m]))
                    for i, m in enumerate(MODALITIES)
                    if self.modalityWeights[m] > 0]
        self._selected_idx = [i for i, _ in selected]
        if selected:
            W_cat = jnp.concatenate(
                [backbone_W[i] * w for i, w in selected], axis=0)          # (Mnz*D, C) f32
            b_tot = sum(backbone_b[i] * w for i, w in selected)            # (C,) f32
            self._W_cat = jnp.pad(W_cat, ((0, 0), (0, pad_c))).astype(jnp.bfloat16)  # (K, Cpad)
            self._b_total = jnp.pad(b_tot, (0, pad_c))[None, :].astype(jnp.float32)  # (1, Cpad)
        else:
            self._W_cat = None
            self._b_total = None

    def forward(self, rgb=None, flow=None, depth=None, skeleton=None,
                face=None, right_hand=None, left_hand=None):
        if self._W_cat is None:
            # Matches PyTorch behavior: nonZeroModalities[0] raises IndexError.
            raise IndexError("Sees7: all modality weights are zero; no stream to fuse.")
        inputs = {
            "rgb": rgb, "flow": flow, "depth": depth, "skeleton": skeleton,
            "face": face, "left_hand": left_hand, "right_hand": right_hand,
        }
        # Only selected (nonzero-weight) modalities feed the kernel; with the
        # default weights (skeleton only) there is NO stack/concatenate op.
        xs = [jnp.asarray(inputs[MODALITIES[i]]).astype(jnp.bfloat16)
              for i in self._selected_idx]
        x_cat = xs[0] if len(xs) == 1 else jnp.concatenate(xs, axis=-1)  # (B, Mnz*D)

        B = x_cat.shape[0]
        Bp = _round_up(max(B, SUBLANE), SUBLANE)
        if Bp != B:
            # Full (8, Cpad) sublane group -> unmasked vst; zero rows sliced off.
            x_cat = jnp.pad(x_cat, ((0, Bp - B), (0, 0)))

        out_padded = fused_weighted_streams(x_cat, self._W_cat, self._b_total)
        # Single combined slice: drop batch padding and lane padding (512->400).
        # TODO(synk): at real batch sizes, let the padded tensor flow to the
        # consumer instead of slicing here to avoid an extra output pass.
        cls_score = out_padded[:B, :self._C]
        # self.head is None -> no head applied.
        return cls_score


if __name__ == "__main__":
    key = jax.random.PRNGKey(0)
    B, D, C, M = 2, 32, NUM_CLASSES, len(MODALITIES)

    k_in, k_w, k_b = jax.random.split(key, 3)
    modal_keys = jax.random.split(k_in, M)
    modal_inputs = {
        m: jax.random.normal(mk, (B, D), dtype=jnp.float32)
        for m, mk in zip(MODALITIES, modal_keys)
    }
    backbone_W = 0.02 * jax.random.normal(k_w, (M, D, C), dtype=jnp.float32)
    backbone_b = 0.02 * jax.random.normal(k_b, (M, C), dtype=jnp.float32)

    model = Sees7(backbone_W, backbone_b)
    out = model.forward(
        rgb=modal_inputs["rgb"],
        flow=modal_inputs["flow"],
        depth=modal_inputs["depth"],
        skeleton=modal_inputs["skeleton"],
        face=modal_inputs["face"],
        right_hand=modal_inputs["right_hand"],
        left_hand=modal_inputs["left_hand"],
    )
    out = jax.block_until_ready(out)
    assert out.shape == (B, C) and out.dtype == jnp.float32

    # Pure-JAX f32 reference matching the PyTorch control flow (all 7 streams
    # computed, then nonzero-weight streams summed).  Kernel feeds bf16
    # weights/activations with f32 accumulation -> loosened tolerance.
    x_stack = jnp.stack([modal_inputs[m] for m in MODALITIES], axis=0)
    scores_ref = jnp.einsum("mbd,mdc->mbc", x_stack, backbone_W) + backbone_b[:, None, :]
    stream_ref = {m: scores_ref[i] for i, m in enumerate(MODALITIES)}
    expected = None
    for m, w in model.modalityWeights.items():
        if w > 0:
            term = stream_ref[m] * w
            expected = term if expected is None else expected + term
    assert jnp.allclose(out, expected, atol=2e-2, rtol=2e-2), (
        "mismatch vs reference; max abs diff = "
        f"{float(jnp.max(jnp.abs(out - expected)))}")

    print("KERNEL_OK")
</pallas_src>

<mosaic_0001>
module attributes {stable_mosaic.version = 11 : i64} {
  func.func @_fused_stream_fusion_kernel(%arg0: i32, %arg1: memref<8x32xbf16, #tpu.memory_space<vmem>>, %arg2: memref<32x512xbf16, #tpu.memory_space<vmem>>, %arg3: memref<1x512xf32, #tpu.memory_space<vmem>>, %arg4: memref<8x512xf32, #tpu.memory_space<vmem>>) attributes {dimension_semantics = [#tpu.dimension_semantics<arbitrary>], iteration_bounds = array<i64: 1>, scalar_prefetch = 0 : i64, scratch_operands = 0 : i64, tpu.core_type = #tpu.core_type<tc>, window_params = [{pipeline_mode = #tpu.pipeline_mode<synchronous>, transform_indices = @transform_0, window_bounds = array<i64: 8, 32>}, {pipeline_mode = #tpu.pipeline_mode<synchronous>, transform_indices = @transform_1, window_bounds = array<i64: 32, 512>}, {pipeline_mode = #tpu.pipeline_mode<synchronous>, transform_indices = @transform_2, window_bounds = array<i64: 1, 512>}, {pipeline_mode = #tpu.pipeline_mode<synchronous>, transform_indices = @transform_3, window_bounds = array<i64: 8, 512>}]} {
    %c0 = arith.constant 0 : index
    %c0_0 = arith.constant 0 : index
    %0 = vector.load %arg1[%c0, %c0_0] : memref<8x32xbf16, #tpu.memory_space<vmem>>, vector<8x32xbf16>
    %c0_1 = arith.constant 0 : index
    %c0_2 = arith.constant 0 : index
    %1 = vector.load %arg2[%c0_1, %c0_2] : memref<32x512xbf16, #tpu.memory_space<vmem>>, vector<32x512xbf16>
    %cst = arith.constant dense<0.000000e+00> : vector<8x512xf32>
    %2 = tpu.matmul %0, %1, %cst {dimension_numbers = #tpu.dot_dimension_numbers<[1], [0], [0], [1], [0, 0, 1, 1], [], []>} : vector<8x32xbf16>, vector<32x512xbf16>, vector<8x512xf32> -> vector<8x512xf32>
    %c0_3 = arith.constant 0 : index
    %c0_4 = arith.constant 0 : index
    %3 = vector.load %arg3[%c0_3, %c0_4] : memref<1x512xf32, #tpu.memory_space<vmem>>, vector<1x512xf32>
    %4 = vector.broadcast %3 : vector<1x512xf32> to vector<8x512xf32>
    %5 = arith.addf %2, %4 : vector<8x512xf32>
    %c0_5 = arith.constant 0 : index
    %c0_6 = arith.constant 0 : index
    %6 = vector.load %arg4[%c0_5, %c0_6] : memref<8x512xf32, #tpu.memory_space<vmem>>, vector<8x512xf32>
    tpu.vector_store %arg4[%c0_5, %c0_6], %5 {strides = array<i32>} : memref<8x512xf32, #tpu.memory_space<vmem>>, vector<8x512xf32>,
    return
  }
  func.func @transform_0(%arg0: i32) -> (i32, i32) {
    %c0_i32 = arith.constant 0 : i32
    %c0_i32_0 = arith.constant 0 : i32
    %c0_i32_1 = arith.constant 0 : i32
    return %c0_i32, %c0_i32_0 : i32, i32
  }
  func.func @transform_1(%arg0: i32) -> (i32, i32) {
    %c0_i32 = arith.constant 0 : i32
    %c0_i32_0 = arith.constant 0 : i32
    %c0_i32_1 = arith.constant 0 : i32
    return %c0_i32, %c0_i32_0 : i32, i32
  }
  func.func @transform_2(%arg0: i32) -> (i32, i32) {
    %c0_i32 = arith.constant 0 : i32
    %c0_i32_0 = arith.constant 0 : i32
    %c0_i32_1 = arith.constant 0 : i32
    return %c0_i32, %c0_i32_0 : i32, i32
  }
  func.func @transform_3(%arg0: i32) -> (i32, i32) {
    %c0_i32 = arith.constant 0 : i32
    %c0_i32_0 = arith.constant 0 : i32
    %c0_i32_1 = arith.constant 0 : i32
    return %c0_i32, %c0_i32_0 : i32, i32
  }
}

</mosaic_0001>

<llo_original>
// kernel: tpu_custom_call.1
$region0: #{tpu_custom_call.1}
  #allocation0 [shape = 'u32[]', space=smem, size = 0x4, offset = 0x4, fixed_abs, tag = 'smem constant byte address 0x4 - core index']
  #allocation1 [shape = 'u32[144,128]{1,0:T(1,128)}', space=vmem, size = 0x12000, scoped, tag = 'internal scratch']
  %s0 = inlined_call_operand.hbm [shape: bf16[8,32], index: 0, kind: input, shape index: {}]
  %s1 = inlined_call_operand.hbm [shape: bf16[32,512], index: 1, kind: input, shape index: {}]
  %s2 = inlined_call_operand.hbm [shape: f32[1,512], index: 2, kind: input, shape index: {}]
  %s3 = inlined_call_operand.hbm [shape: f32[8,512], index: 3, kind: output, shape index: {}]
  %s4 = sld [smem:[#allocation0]]
  $region34: #{tpu_custom_call.1} parent=0
    _
  %s6 = ssub.s32 1, %s4
  %s7 = scalar_select 0, %s6, %s4
  $region1: #{tpu_custom_call.1} parent=0
    #allocation2 [shape = 'u8[2048]{0}', space=vmem, size = 0x800, scoped, tag = 'input window, operand 0, single buffered']
    #allocation3 [shape = 's32[1]{0}', space=sflag, size = 0x4, scoped, tag = 'scoped memory for tpu_custom_call.1']
    #allocation4 [shape = 's32[1]{0}', space=sflag, size = 0x4, scoped, tag = 'scoped memory for tpu_custom_call.1']
    #allocation5 [shape = 'u8[32768]{0}', space=vmem, size = 0x8000, scoped, tag = 'input window, operand 1, single buffered']
    #allocation6 [shape = 's32[1]{0}', space=sflag, size = 0x4, scoped, tag = 'scoped memory for tpu_custom_call.1']
    #allocation7 [shape = 'u8[2048]{0}', space=vmem, size = 0x800, scoped, tag = 'input window, operand 2, single buffered']
    #allocation8 [shape = 'u8[16384]{0}', space=vmem, size = 0x4000, scoped, tag = 'output window, operand 0, single buffered']
    %8 = vsyncpa [#allocation3], 0
    %9 = vsyncpa [#allocation6], 0
    %10 = vsyncpa [#allocation4], 0
    // Predicated region
    $region2: #{tpu_custom_call.1} parent=1 // pred_check
      _
    $region3: #{tpu_custom_call.1} parent=1 // pred_check_branch
      %12 = sbr.rel (0) target = $region5
    $region4: #{tpu_custom_call.1} parent=1 // pred_region
      %s14 = ssub.s32 64, 64
      %15 = vsyncadd [#allocation3], %s14
      %s17 = sshll.u32 [#allocation2], 4
      %s18 = int_to_ptr.vmem [resolvable:$true] %s17
      %20 = dma.hbm_to_vmem [thread:$0]  %s0, 64, %s18, [#allocation3]
    $region5: #{tpu_custom_call.1} parent=1 // pred_fallthru
      _
    // Predicated region
    $region6: #{tpu_custom_call.1} parent=1 // pred_check
      _
    $region7: #{tpu_custom_call.1} parent=1 // pred_check_branch
      %22 = sbr.rel (0) target = $region9
    $region8: #{tpu_custom_call.1} parent=1 // pred_region
      %s24 = ssub.s32 1024, 1024
      %25 = vsyncadd [#allocation6], %s24
      %s26 = sshll.u32 [#allocation5], 4
      %s27 = int_to_ptr.vmem [resolvable:$true] %s26
      %32 = dma.hbm_to_vmem [thread:$0]  %s1, 1024, %s27, [#allocation6], 256, 256, 16
    $region9: #{tpu_custom_call.1} parent=1 // pred_fallthru
      _
    // Predicated region
    $region10: #{tpu_custom_call.1} parent=1 // pred_check
      _
    $region11: #{tpu_custom_call.1} parent=1 // pred_check_branch
      %34 = sbr.rel (0) target = $region13
    $region12: #{tpu_custom_call.1} parent=1 // pred_region
      %s36 = ssub.s32 64, 64
      %37 = vsyncadd [#allocation6], %s36
      %s39 = sshll.u32 [#allocation7], 4
      %s40 = int_to_ptr.vmem [resolvable:$true] %s39
      %42 = dma.hbm_to_vmem [thread:$0]  %s2, 64, %s40, [#allocation6]
    $region13: #{tpu_custom_call.1} parent=1 // pred_fallthru
      _
    // Predicated region
    $region14: #{tpu_custom_call.1} parent=1 // pred_check
      _
    $region15: #{tpu_custom_call.1} parent=1 // pred_check_branch
      %44 = sbr.rel (0) target = $region17
    $region16: #{tpu_custom_call.1} parent=1 // pred_region
      %45 = dma.done [#allocation3], 64
    $region17: #{tpu_custom_call.1} parent=1 // pred_fallthru
      _
    // Predicated region
    $region18: #{tpu_custom_call.1} parent=1 // pred_check
      _
    $region19: #{tpu_custom_call.1} parent=1 // pred_check_branch
      %47 = sbr.rel (0) target = $region21
    $region20: #{tpu_custom_call.1} parent=1 // pred_region
      %48 = dma.done [#allocation6], 1024
    $region21: #{tpu_custom_call.1} parent=1 // pred_fallthru
      _
    // Predicated region
    $region22: #{tpu_custom_call.1} parent=1 // pred_check
      _
    $region23: #{tpu_custom_call.1} parent=1 // pred_check_branch
      %50 = sbr.rel (0) target = $region25
    $region24: #{tpu_custom_call.1} parent=1 // pred_region
      %51 = dma.done [#allocation6], 64
    $region25: #{tpu_custom_call.1} parent=1 // pred_fallthru
      _
    %v53 = vld [vmem:[#allocation2] sm:$0xf]
    %v54 = vld [vmem:[#allocation5] sm:$0xff]
    %v55 = vld [vmem:[#allocation5 + $0x8] sm:$0xff]
    %v56 = vld [vmem:[#allocation5 + $0x10] sm:$0xff]
    %v57 = vld [vmem:[#allocation5 + $0x18] sm:$0xff]
    %v58 = vld [vmem:[#allocation5 + $0x20] sm:$0xff]
    %v59 = vld [vmem:[#allocation5 + $0x28] sm:$0xff]
    %v60 = vld [vmem:[#allocation5 + $0x30] sm:$0xff]
    %v61 = vld [vmem:[#allocation5 + $0x38] sm:$0xff]
    %v62 = vld [vmem:[#allocation7] sm:$0xf]
    %v64 = vlaneseq
    %v65 = vshrl.u32 %v64, 7
    %v66 = vsub.s32 0, %v65
    %v67 = vrot.slane %v62, %v66
    %v68 = vlaneseq
    %v69 = vshrl.u32 %v68, 7
    %v70 = vsub.s32 1, %v69
    %v71 = vrot.slane %v62, %v70
    %v72 = vlaneseq
    %v73 = vshrl.u32 %v72, 7
    %v74 = vsub.s32 2, %v73
    %v75 = vrot.slane %v62, %v74
    %v76 = vlaneseq
    %v77 = vshrl.u32 %v76, 7
    %v78 = vsub.s32 3, %v77
    %v79 = vrot.slane %v62, %v78
    %v92 = vunpack.c.l.b16 %v54
    %v93 = vunpack.c.h.b16 %v54
    %v94 = vunpack.c.l.b16 %v55
    %v95 = vunpack.c.h.b16 %v55
    %v96 = vunpack.c.l.b16 %v56
    %v97 = vunpack.c.h.b16 %v56
    %v98 = vunpack.c.l.b16 %v57
    %v99 = vunpack.c.h.b16 %v57
    %v100 = vunpack.c.l.b16 %v58
    %v101 = vunpack.c.h.b16 %v58
    %v102 = vunpack.c.l.b16 %v59
    %v103 = vunpack.c.h.b16 %v59
    %v104 = vunpack.c.l.b16 %v60
    %v105 = vunpack.c.h.b16 %v60
    %v106 = vunpack.c.l.b16 %v61
    %v107 = vunpack.c.h.b16 %v61
    %v108 = vpack.c.b16 %v96, %v92
    %v109 = vpack.c.b16 %v97, %v93
    %v110 = vpack.c.b16 %v98, %v94
    %v111 = vpack.c.b16 %v99, %v95
    %v112 = vpack.c.b16 %v104, %v100
    %v113 = vpack.c.b16 %v105, %v101
    %v114 = vpack.c.b16 %v106, %v102
    %v115 = vpack.c.b16 %v107, %v103
    %vm124 = vcmask 261120
    %v126 = vsel %vm124, %v53, 0
    %128 = vmatprep.subr.bf16.mxu0 0
    %129 = vmatpush1.bf16.msra.mxu0 0
    %130 = vmatprep.subr.bf16.mxu0 0
    %131 = vmatpush1.bf16.msra.mxu0 0
    %132 = vmatprep.subr.bf16.mxu0 0
    %133 = vmatpush1.bf16.msra.mxu0 0
    %134 = vmatprep.subr.bf16.mxu0 0
    %135 = vmatpush1.bf16.msra.mxu0 0
    %136 = vmatprep.subr.bf16.mxu0 0
    %137 = vmatpush1.bf16.msra.mxu0 0
    %138 = vmatprep.subr.bf16.mxu0 0
    %139 = vmatpush1.bf16.msra.mxu0 0
    %140 = vmatprep.subr.bf16.mxu0 %v113
    %141 = vmatpush1.bf16.msra.mxu0 %v112
    %142 = vmatprep.subr.bf16.mxu0 %v109
    %143 = vmatpush1.bf16.msra.mxu0 %v108
    %144 = vmatprep.subr.bf16.mxu0 0
    %145 = vmatpush2.bf16.msra.mxu0 0
    %146 = vmatprep.subr.bf16.mxu0 0
    %147 = vmatpush2.bf16.msra.mxu0 0
    %148 = vmatprep.subr.bf16.mxu0 0
    %149 = vmatpush2.bf16.msra.mxu0 0
    %150 = vmatprep.subr.bf16.mxu0 0
    %151 = vmatpush2.bf16.msra.mxu0 0
    %152 = vmatprep.subr.bf16.mxu0 0
    %153 = vmatpush2.bf16.msra.mxu0 0
    %154 = vmatprep.subr.bf16.mxu0 0
    %155 = vmatpush2.bf16.msra.mxu0 0
    %156 = vmatprep.subr.bf16.mxu0 0
    %157 = vmatpush2.bf16.msra.mxu0 0
    %158 = vmatprep.subr.bf16.mxu0 0
    %159 = vmatpush2.bf16.msra.mxu0 0
    %160 = vmatprep.mubr.bf16.mxu0 0
    %161 = vmatmul.mubr.bf16.gmra.mxu0 %v126
    %v162 = vpop.f32.mrf.mxu0
    %v163 = vadd.f32 %v67, %v162
    %v164 = vpop.f32.mrf.mxu0
    %v165 = vadd.f32 %v71, %v164
    %v166 = vpop.f32.mrf.mxu0
    %v167 = vpop.f32.mrf.mxu0
    %168 = vdwg.mxu0
    %169 = vmatprep.subr.bf16.mxu0 0
    %170 = vmatpush1.bf16.msra.mxu0 0
    %171 = vmatprep.subr.bf16.mxu0 0
    %172 = vmatpush1.bf16.msra.mxu0 0
    %173 = vmatprep.subr.bf16.mxu0 0
    %174 = vmatpush1.bf16.msra.mxu0 0
    %175 = vmatprep.subr.bf16.mxu0 0
    %176 = vmatpush1.bf16.msra.mxu0 0
    %177 = vmatprep.subr.bf16.mxu0 0
    %178 = vmatpush1.bf16.msra.mxu0 0
    %179 = vmatprep.subr.bf16.mxu0 0
    %180 = vmatpush1.bf16.msra.mxu0 0
    %181 = vmatprep.subr.bf16.mxu0 %v115
    %182 = vmatpush1.bf16.msra.mxu0 %v114
    %183 = vmatprep.subr.bf16.mxu0 %v111
    %184 = vmatpush1.bf16.msra.mxu0 %v110
    %185 = vmatprep.subr.bf16.mxu0 0
    %186 = vmatpush2.bf16.msra.mxu0 0
    %187 = vmatprep.subr.bf16.mxu0 0
    %188 = vmatpush2.bf16.msra.mxu0 0
    %189 = vmatprep.subr.bf16.mxu0 0
    %190 = vmatpush2.bf16.msra.mxu0 0
    %191 = vmatprep.subr.bf16.mxu0 0
    %192 = vmatpush2.bf16.msra.mxu0 0
    %193 = vmatprep.subr.bf16.mxu0 0
    %194 = vmatpush2.bf16.msra.mxu0 0
    %195 = vmatprep.subr.bf16.mxu0 0
    %196 = vmatpush2.bf16.msra.mxu0 0
    %197 = vmatprep.subr.bf16.mxu0 0
    %198 = vmatpush2.bf16.msra.mxu0 0
    %199 = vmatprep.subr.bf16.mxu0 0
    %200 = vmatpush2.bf16.msra.mxu0 0
    %201 = vmatprep.mubr.bf16.mxu0 0
    %202 = vmatmul.mubr.bf16.gmra.mxu0 %v126
    %v203 = vpop.f32.mrf.mxu0
    %v204 = vadd.f32 %v75, %v203
    %v205 = vpop.f32.mrf.mxu0
    %v206 = vadd.f32 %v79, %v205
    %v207 = vpop.f32.mrf.mxu0
    %v208 = vpop.f32.mrf.mxu0
    %209 = vdwg.mxu0
    %210 = vst [vmem:[#allocation8] sm:$0xff] %v163
    %211 = vst [vmem:[#allocation8 + $0x8] sm:$0xff] %v165
    %212 = vst [vmem:[#allocation8 + $0x10] sm:$0xff] %v204
    %213 = vst [vmem:[#allocation8 + $0x18] sm:$0xff] %v206
    // Predicated region
    $region26: #{tpu_custom_call.1} parent=1 // pred_check
      _
    $region27: #{tpu_custom_call.1} parent=1 // pred_check_branch
      %215 = sbr.rel (0) target = $region29
    $region28: #{tpu_custom_call.1} parent=1 // pred_region
      %s217 = ssub.s32 512, 512
      %218 = vsyncadd [#allocation4], %s217
      %s220 = sshll.u32 [#allocation8], 4
      %s221 = int_to_ptr.vmem [resolvable:$true] %s220
      %223 = dma.vmem_to_hbm [thread:$0]  %s221, 512, %s3, [#allocation4]
    $region29: #{tpu_custom_call.1} parent=1 // pred_fallthru
      _
    // Predicated region
    $region30: #{tpu_custom_call.1} parent=1 // pred_check
      _
    $region31: #{tpu_custom_call.1} parent=1 // pred_check_branch
      %225 = sbr.rel (0) target = $region33
    $region32: #{tpu_custom_call.1} parent=1 // pred_region
      %226 = dma.done [#allocation4], 512
    $region33: #{tpu_custom_call.1} parent=1 // pred_fallthru
      _
    %227 = vsyncpa [#allocation3], 1
    %228 = vsyncpa [#allocation6], 1
    %229 = vsyncpa [#allocation4], 1

</llo_original>
